<compile_context>
chip_gen: v6e
topology: v6e:2x2x1
jax: 0.10.0
libtpu: 0.0.40
codegen_flags: <defaults>
</compile_context>

<pallas_src>
import functools

import jax
import jax.numpy as jnp
from jax import lax
from jax.experimental import pallas as pl
from jax.experimental.pallas import tpu as pltpu


def _round_up(x, m):
    return ((x + m - 1) // m) * m


def _ctc_greedy_kernel(e_ref, out_ref, carry_ref, *, blank: int):
    """e_ref:   (V, TILE_T) logits, time on the lane axis (native dtype).
    out_ref:    (1, TILE_T) int32 -- label index if kept, -1 otherwise.
    carry_ref:  (1, 1) int32 VMEM scratch carrying the previous tile's last
                argmax index so unique_consecutive is correct across tiles
                (grid axis is sequential / "arbitrary")."""
    t = pl.program_id(0)

    @pl.when(t == 0)
    def _():
        # -1 never equals a valid label index -> the very first timestep is
        # always kept (unless blank), matching torch.unique_consecutive.
        carry_ref[...] = jnp.full((1, 1), -1, jnp.int32)

    e = e_ref[...]                                             # (V, tile)
    V, tile = e.shape

    # First-occurrence argmax over the label (sublane) axis:
    # max -> equality mask -> min index.  Both reductions are sublane (XLU)
    # reductions over only 32 packed sublanes.
    mx = jnp.max(e, axis=0, keepdims=True)                     # (1, tile)
    sub_iota = lax.broadcasted_iota(jnp.int32, (V, tile), 0)   # (V, tile)
    cand = jnp.where(e == mx, sub_iota, jnp.int32(V))          # sentinel = V
    idx = jnp.min(cand, axis=0, keepdims=True)                 # (1, tile) i32
    # All-NaN columns would leave the sentinel V; clamp so host indexing can
    # never go out of range.
    idx = jnp.minimum(idx, jnp.int32(V - 1))

    # unique_consecutive: keep position t iff idx[t] != idx[t-1].
    # pltpu.roll is an XLU lane rotation (separate bundle slot -> cheap).
    wrapped = pltpu.roll(idx, shift=1, axis=1)                 # lane0 wraps
    lane_iota = lax.broadcasted_iota(jnp.int32, (1, tile), 1)
    prev = jnp.where(lane_iota == 0, carry_ref[...], wrapped)  # fix boundary

    keep = jnp.logical_and(idx != prev, idx != jnp.int32(blank))
    # Fused single output stream: kept index, or -1 (dedup-dropped or blank).
    out_ref[...] = jnp.where(keep, idx, jnp.int32(-1))

    # Carry this tile's last argmax into the next tile (lane 0 of `wrapped`
    # holds idx[:, tile-1]).
    carry_ref[...] = wrapped[:, 0:1]


@functools.partial(jax.jit, static_argnames=("blank", "tile_t"))
def greedy_ctc_indices(emission, blank: int = 0, tile_t: int = 2048):
    """Returns a length-T int32 array: kept label index, or -1 if dropped."""
    T, V = emission.shape
    tile = min(tile_t, _round_up(T, 128))          # lane-axis tile, mult of 128
    T_pad = _round_up(T, tile)

    # Lane-dense layout: [V, T_pad], time on the lane axis.  No wrapper-side
    # dtype cast: the kernel computes in the emission's native dtype (bf16
    # stays bf16 on v6e/v7x; f32 here).  Padded columns (zeros -> argmax ==
    # blank) are sliced off below and never influence earlier timesteps.
    em_t = jnp.pad(jnp.transpose(emission), ((0, 0), (0, T_pad - T)))

    out = pl.pallas_call(
        functools.partial(_ctc_greedy_kernel, blank=blank),
        out_shape=jax.ShapeDtypeStruct((1, T_pad), jnp.int32),
        grid=(T_pad // tile,),
        in_specs=[pl.BlockSpec((V, tile), lambda i: (0, i))],
        out_specs=pl.BlockSpec((1, tile), lambda i: (0, i)),
        scratch_shapes=[pltpu.VMEM((1, 1), jnp.int32)],
        compiler_params=pltpu.CompilerParams(
            # Sequential: the dedup carry flows tile -> tile.
            dimension_semantics=("arbitrary",)
        ),
    )(em_t)
    return out[0, :T]


class GreedyCTCDecoder:
    """JAX/Pallas port of the PyTorch GreedyCTCDecoder."""

    def __init__(self, labels, blank: int = 0):
        self.labels = labels
        self.blank = blank

    def __call__(self, emission) -> str:
        fused = greedy_ctc_indices(emission, blank=self.blank)
        fused_host = jax.device_get(fused)
        # TODO(synk): variable-length compaction + string join has no Pallas
        # equivalent (returns a Python str); it stays on the host.
        return "".join(self.labels[int(i)] for i in fused_host if i >= 0)


def _reference_decode(emission, labels, blank=0):
    """Pure-Python reference mirroring the PyTorch forward semantics."""
    import numpy as np
    e = np.asarray(emission)
    indices = np.argmax(e, axis=-1)
    dedup = [int(indices[0])] + [
        int(indices[t]) for t in range(1, len(indices))
        if indices[t] != indices[t - 1]
    ]
    return "".join(labels[i] for i in dedup if i != blank)


if __name__ == "__main__":
    # 29 labels, as in the wav2vec2 ASR bundle ('-' is the blank at index 0).
    labels = ("-", "|", "E", "T", "A", "O", "N", "I", "H", "S", "R", "D", "L",
              "U", "M", "W", "C", "F", "G", "Y", "P", "B", "V", "K", "'", "X",
              "J", "Q", "Z")
    V = len(labels)
    decoder = GreedyCTCDecoder(labels, blank=0)
    key = jax.random.PRNGKey(0)
    k1, k2, k3 = jax.random.split(key, 3)

    # Small emission with forced consecutive repeats and blanks so that both
    # the dedup and blank-drop paths are exercised.
    T = 16
    seq = jnp.repeat(jax.random.randint(k1, (T // 2 + 1,), 0, V), 2)[:T]
    emission = (jax.nn.one_hot(seq, V, dtype=jnp.float32) * 5.0
                + 0.01 * jax.random.normal(k2, (T, V), dtype=jnp.float32))
    fused = greedy_ctc_indices(emission, blank=0)
    jax.block_until_ready(fused)
    got = "".join(labels[int(i)] for i in jax.device_get(fused) if i >= 0)
    want = _reference_decode(jax.device_get(emission), labels, blank=0)
    assert got == want, (got, want)

    # Multi-tile path (tile_t=128 -> 3 grid steps) exercising the cross-tile
    # unique_consecutive carry.
    T2 = 300
    seq2 = jnp.repeat(jax.random.randint(k3, (T2 // 3 + 1,), 0, V), 3)[:T2]
    emission2 = jax.nn.one_hot(seq2, V, dtype=jnp.float32) * 5.0
    fused2 = greedy_ctc_indices(emission2, blank=0, tile_t=128)
    jax.block_until_ready(fused2)
    got2 = "".join(labels[int(i)] for i in jax.device_get(fused2) if i >= 0)
    want2 = _reference_decode(jax.device_get(emission2), labels, blank=0)
    assert got2 == want2, (got2, want2)

    # Also exercise the class wrapper (same path as the PyTorch forward).
    assert decoder(emission) == want

    print("KERNEL_OK")
</pallas_src>

<mosaic_0001>
module attributes {stable_mosaic.version = 11 : i64} {
  func.func @_ctc_greedy_kernel(%arg0: i32, %arg1: memref<29x128xf32, #tpu.memory_space<vmem>>, %arg2: memref<1x128xi32, #tpu.memory_space<vmem>>, %arg3: memref<1x1xi32, #tpu.memory_space<vmem>>) attributes {dimension_semantics = [#tpu.dimension_semantics<arbitrary>], iteration_bounds = array<i64: 1>, scalar_prefetch = 0 : i64, scratch_operands = 1 : i64, tpu.core_type = #tpu.core_type<tc>, window_params = [{transform_indices = @transform_0, window_bounds = array<i64: 29, 128>}, {transform_indices = @transform_1, window_bounds = array<i64: 1, 128>}]} {
    %c0_i32 = arith.constant 0 : i32
    %0 = arith.cmpi eq, %arg0, %c0_i32 : i32
    %1 = arith.extui %0 : i1 to i32
    %c0_i32_0 = arith.constant 0 : i32
    %2 = arith.cmpi ne, %1, %c0_i32_0 : i32
    scf.if %2 {
      %c-1_i32_11 = arith.constant -1 : i32
      %32 = vector.broadcast %c-1_i32_11 : i32 to vector<1x1xi32>
      %c0_12 = arith.constant 0 : index
      %c0_13 = arith.constant 0 : index
      %33 = vector.load %arg3[%c0_12, %c0_13] : memref<1x1xi32, #tpu.memory_space<vmem>>, vector<1x1xi32>
      tpu.vector_store %arg3[%c0_12, %c0_13], %32 {strides = array<i32>} : memref<1x1xi32, #tpu.memory_space<vmem>>, vector<1x1xi32>,
    } else {
    }
    %c0 = arith.constant 0 : index
    %c0_1 = arith.constant 0 : index
    %3 = vector.load %arg1[%c0, %c0_1] : memref<29x128xf32, #tpu.memory_space<vmem>>, vector<29x128xf32>
    %cst = arith.constant dense<0xFF800000> : vector<128xf32>
    %4 = vector.multi_reduction <maximumf>, %3, %cst [0] : vector<29x128xf32> to vector<128xf32>
    %5 = vector.shape_cast %4 : vector<128xf32> to vector<1x128xf32>
    %6 = tpu.iota {dimensions = array<i32: 0>} : vector<29x128xi32>
    %7 = vector.broadcast %5 : vector<1x128xf32> to vector<29x128xf32>
    %8 = arith.cmpf oeq, %3, %7 : vector<29x128xf32>
    %c29_i32 = arith.constant 29 : i32
    %9 = vector.broadcast %c29_i32 : i32 to vector<29x128xi32>
    %10 = arith.select %8, %6, %9 : vector<29x128xi1>, vector<29x128xi32>
    %cst_2 = arith.constant dense<2147483647> : vector<128xi32>
    %11 = vector.multi_reduction <minsi>, %10, %cst_2 [0] : vector<29x128xi32> to vector<128xi32>
    %12 = vector.shape_cast %11 : vector<128xi32> to vector<1x128xi32>
    %c28_i32 = arith.constant 28 : i32
    %13 = vector.broadcast %c28_i32 : i32 to vector<1x128xi32>
    %14 = arith.minsi %12, %13 : vector<1x128xi32>
    %c1_i32 = arith.constant 1 : i32
    %15 = tpu.dynamic_rotate %14 by %c1_i32 dim 1 : vector<1x128xi32>, i32 -> vector<1x128xi32>
    %16 = tpu.iota {dimensions = array<i32: 1>} : vector<1x128xi32>
    %c0_i32_3 = arith.constant 0 : i32
    %17 = vector.broadcast %c0_i32_3 : i32 to vector<1x128xi32>
    %18 = arith.cmpi eq, %16, %17 : vector<1x128xi32>
    %c0_4 = arith.constant 0 : index
    %c0_5 = arith.constant 0 : index
    %19 = vector.load %arg3[%c0_4, %c0_5] : memref<1x1xi32, #tpu.memory_space<vmem>>, vector<1x1xi32>
    %20 = vector.shape_cast %19 : vector<1x1xi32> to vector<1x1xi32>
    %21 = vector.broadcast %20 : vector<1x1xi32> to vector<1x128xi32>
    %22 = arith.select %18, %21, %15 : vector<1x128xi1>, vector<1x128xi32>
    %23 = arith.cmpi ne, %14, %22 : vector<1x128xi32>
    %c0_i32_6 = arith.constant 0 : i32
    %24 = vector.broadcast %c0_i32_6 : i32 to vector<1x128xi32>
    %25 = arith.cmpi ne, %14, %24 : vector<1x128xi32>
    %26 = arith.andi %23, %25 : vector<1x128xi1>
    %c-1_i32 = arith.constant -1 : i32
    %27 = vector.broadcast %c-1_i32 : i32 to vector<1x128xi32>
    %28 = arith.select %26, %14, %27 : vector<1x128xi1>, vector<1x128xi32>
    %c0_7 = arith.constant 0 : index
    %c0_8 = arith.constant 0 : index
    %29 = vector.load %arg2[%c0_7, %c0_8] : memref<1x128xi32, #tpu.memory_space<vmem>>, vector<1x128xi32>
    tpu.vector_store %arg2[%c0_7, %c0_8], %28 {strides = array<i32>} : memref<1x128xi32, #tpu.memory_space<vmem>>, vector<1x128xi32>,
    %30 = vector.extract_strided_slice %15 {offsets = [0, 0], sizes = [1, 1], strides = [1, 1]} : vector<1x128xi32> to vector<1x1xi32>
    %c0_9 = arith.constant 0 : index
    %c0_10 = arith.constant 0 : index
    %31 = vector.load %arg3[%c0_9, %c0_10] : memref<1x1xi32, #tpu.memory_space<vmem>>, vector<1x1xi32>
    tpu.vector_store %arg3[%c0_9, %c0_10], %30 {strides = array<i32>} : memref<1x1xi32, #tpu.memory_space<vmem>>, vector<1x1xi32>,
    return
  }
  func.func @transform_0(%arg0: i32) -> (i32, i32) {
    %c0_i32 = arith.constant 0 : i32
    %c0_i32_0 = arith.constant 0 : i32
    return %c0_i32, %arg0 : i32, i32
  }
  func.func @transform_1(%arg0: i32) -> (i32, i32) {
    %c0_i32 = arith.constant 0 : i32
    %c0_i32_0 = arith.constant 0 : i32
    return %c0_i32, %arg0 : i32, i32
  }
}

</mosaic_0001>

<llo_original>
// kernel: greedy_ctc_indices.1
$region0: #{greedy_ctc_indices.1}
  #allocation0 [shape = 'u32[]', space=smem, size = 0x4, offset = 0x4, fixed_abs, tag = 'smem constant byte address 0x4 - core index']
  #allocation1 [shape = 'u32[144,128]{1,0:T(1,128)}', space=vmem, size = 0x12000, scoped, tag = 'internal scratch']
  #allocation2 [shape = 's32[1,1]{1,0:T(1,128)}', space=vmem, size = 0x200, scoped, tag = 'scratch operand']
  %s0 = inlined_call_operand.vmem [shape: f32[29,128], index: 0, kind: input, shape index: {}]
  %s1 = inlined_call_operand.vmem [shape: s32[1,128], index: 1, kind: output, shape index: {}]
  %s2 = sld [smem:[#allocation0]]
  $region18: #{greedy_ctc_indices.1} parent=0
    _
  %s4 = ssub.s32 1, %s2
  %s5 = scalar_select 0, %s4, %s2
  // Predicated region
  $region2: #{greedy_ctc_indices.1} parent=0 // pred_check
    _
  $region3: #{greedy_ctc_indices.1} parent=0 // pred_check_branch
    %7 = sbr.rel (0) target = $region5
  $region4: #{greedy_ctc_indices.1} parent=0 // pred_region
    _
  $region5: #{greedy_ctc_indices.1} parent=0 // pred_fallthru
    _
  %p8 = scmp.eq.s32.totalorder 0, 0
  // Predicated region
  $region6: #{greedy_ctc_indices.1} parent=0 // pred_check
    %p9 = pneg %p8
  $region7: #{greedy_ctc_indices.1} parent=0 // pred_check_branch
    %11 = sbr.rel (%p9) target = $region9
  $region8: #{greedy_ctc_indices.1} parent=0 // pred_region
    %vm12 = vcmask 0
    %13 = vst.msk [vmem:[#allocation2] sm:$0x1] %vm12, 4294967295
  $region9: #{greedy_ctc_indices.1} parent=0 // pred_fallthru
    _
  %v14 = vld [vmem:[%s0] sm:$0xff]
  %v15 = vld [vmem:[%s0 + $0x8] sm:$0xff]
  %v16 = vld [vmem:[%s0 + $0x10] sm:$0xff]
  %v17 = vld [vmem:[%s0 + $0x18] sm:$0x1f]
  %vm18 = vcmask 1044480
  %v19 = vsel %vm18, %v17, -inf
  %v20 = vmax.f32 %v14, %v15
  %v21 = vmax.f32 %v16, %v19
  %v22 = vmax.f32 %v20, %v21
  %v23 = vrot.slane %v22, 4
  %v24 = vmax.f32 %v22, %v23
  %v25 = vrot.slane %v24, 2
  %v26 = vmax.f32 %v24, %v25
  %v27 = vrot.slane %v26, 1
  %v28 = vmax.f32 %v26, %v27
  %v29 = vlaneseq
  %v30 = vshrl.u32 %v29, 7
  %v31 = vadd.s32 %v30, 8
  %v32 = vadd.s32 %v30, 16
  %v33 = vadd.s32 %v30, 24
  %vm34 = vcmp.eq.f32.partialorder %v14, %v28
  %vm35 = vcmp.eq.f32.partialorder %v15, %v28
  %vm36 = vcmp.eq.f32.partialorder %v16, %v28
  %vm37 = vcmp.eq.f32.partialorder %v17, %v28
  %v38 = vsel %vm34, %v30, 29
  %v39 = vsel %vm35, %v31, 29
  %v40 = vsel %vm36, %v32, 29
  %v41 = vsel %vm37, %v33, 29
  %v42 = vsel %vm18, %v41, 2147483647
  %vm43 = vcmp.lt.s32.totalorder %v38, %v39
  %v44 = vsel %vm43, %v38, %v39
  %vm45 = vcmp.lt.s32.totalorder %v40, %v42
  %v46 = vsel %vm45, %v40, %v42
  %vm47 = vcmp.lt.s32.totalorder %v44, %v46
  %v48 = vsel %vm47, %v44, %v46
  %v49 = vrot.slane %v48, 4
  %vm50 = vcmp.lt.s32.totalorder %v48, %v49
  %v51 = vsel %vm50, %v48, %v49
  %v52 = vrot.slane %v51, 2
  %vm53 = vcmp.lt.s32.totalorder %v51, %v52
  %v54 = vsel %vm53, %v51, %v52
  %v55 = vrot.slane %v54, 1
  %vm56 = vcmp.lt.s32.totalorder %v54, %v55
  %v57 = vsel %vm56, %v54, %v55
  %vm58 = vcmp.lt.s32.totalorder %v57, 28
  %v59 = vsel %vm58, %v57, 28
  %60 = vrot.lane.b32.xlu0 %v59, 1
  %v61 = vpop.permute.xlu0 %60
  %v62 = vlaneseq
  %v63 = vand.u32 %v62, 127
  %vm64 = vcmp.eq.s32.totalorder %v63, 0
  %v65 = vld [vmem:[#allocation2] sm:$0x1]
  %66 = vset.pattern.permute.xlu0 0
  %67 = vperm.xlu0 %66, %v65
  %v68 = vpop.permute.xlu0 %67
  %v69 = vlaneseq
  %v70 = vshrl.u32 %v69, 7
  %v71 = vsub.s32 0, %v70
  %v72 = vrot.slane %v68, %v71
  %v73 = vsel %vm64, %v72, %v61
  %vm74 = vcmp.ne.s32.totalorder %v59, %v73
  %vm75 = vcmp.ne.s32.totalorder %v59, 0
  %vm76 = vmand %vm74, %vm75
  %v77 = vsel %vm76, %v59, 4294967295
  %78 = vst [vmem:[%s1] sm:$0x1] %v77
  %vm79 = vcmask 0
  %80 = vst.msk [vmem:[#allocation2] sm:$0x1] %vm79, %v61
  // Predicated region
  $region10: #{greedy_ctc_indices.1} parent=0 // pred_check
    _
  $region11: #{greedy_ctc_indices.1} parent=0 // pred_check_branch
    %82 = sbr.rel (0) target = $region13
  $region12: #{greedy_ctc_indices.1} parent=0 // pred_region
    _
  $region13: #{greedy_ctc_indices.1} parent=0 // pred_fallthru
    _
  // Predicated region
  $region14: #{greedy_ctc_indices.1} parent=0 // pred_check
    _
  $region15: #{greedy_ctc_indices.1} parent=0 // pred_check_branch
    %84 = sbr.rel (0) target = $region17
  $region16: #{greedy_ctc_indices.1} parent=0 // pred_region
    _
  $region17: #{greedy_ctc_indices.1} parent=0 // pred_fallthru
    _

</llo_original>
